<compile_context>
chip_gen: v7x
topology: tpu7x:2x2x1
jax: 0.10.0
libtpu: 0.0.40
codegen_flags: <defaults>
</compile_context>

<pallas_src>
import functools
import math
import numpy as np
import jax
import jax.numpy as jnp
from jax.experimental import pallas as pl
from jax.experimental.pallas import tpu as pltpu

# ---- deterministic "parameters" (non-trainable five-point stencil) ----------
STENCIL = (1.0 / 12.0, -8.0 / 12.0, 0.0, 8.0 / 12.0, -1.0 / 12.0)
PAD_NUM = 2          # pad_num for five-point-stencil
INTERVEL = 1.0       # torch.Tensor([1])

_INV_SCALE = np.float32(1.0 / (12.0 * INTERVEL))   # applied after the x @ (12*C) matmul
_MIN_BLOCK_BYTES = 256 * 1024                       # don't shrink blocks below this


def _round_up(a, b):
    return ((a + b - 1) // b) * b


def _cdiv(a, b):
    return (a + b - 1) // b


# ------------------------- chip / budget selection ----------------------------
def _chip_kind():
    try:
        return jax.devices()[0].device_kind.lower()
    except Exception:
        return ""


def _vmem_capacity_bytes(kind):
    try:
        return int(pltpu.get_tpu_info().vmem_capacity_bytes)
    except Exception:
        pass
    if "v7" in kind:
        return 64 * 1024 * 1024
    if kind:
        return 128 * 1024 * 1024      # v5e / v6e class
    return 64 * 1024 * 1024           # unknown -> conservative (v7x-safe)


@functools.lru_cache(maxsize=1)
def _budgets():
    """(vmem_budget, vmem_limit, block_target_bytes, max_grouped_w, is_v5)."""
    kind = _chip_kind()
    vmem_cap = _vmem_capacity_bytes(kind)
    if vmem_cap >= 96 * 1024 * 1024:          # 128 MiB-VMEM chips (v5e / v6e)
        budget, limit, block_target = 24 << 20, 64 << 20, 4 << 20
    else:                                      # v7x (64 MiB) or unknown
        budget, limit, block_target = 12 << 20, 32 << 20, 2 << 20
    # v5e: keep grouped lane width narrow so the circulant matmul stays
    # HBM-bound (2*w_eff flops/elem vs 0.82 TB/s); v6e/v7x have MXU headroom.
    max_grouped_w = 256 if "v5" in kind else 512
    return budget, limit, block_target, max_grouped_w, ("v5" in kind)


def _choose_row_tile(rows_eff, w_eff, itemsize, vmem_budget, block_target,
                     min_blocks=8):
    """Row tile: multiple of the dtype sublane packing, sized for ~2-4 MiB
    input blocks, capped by the VMEM working-set budget, and split into
    >= min_blocks grid steps when the problem is large enough (pipeline
    overlap; >= ~4 blocks per v7x TensorCore)."""
    row_align = {1: 32, 2: 16}.get(itemsize, 8)
    if rows_eff <= row_align:
        return rows_eff                       # block == full array dim (allowed)
    rows_aligned = _round_up(rows_eff, row_align)

    # Working set per row: double-buffered in/out + ~4 f32-sized temporaries.
    bytes_per_row_resident = (4 * itemsize + 16) * w_eff
    tr = (vmem_budget // bytes_per_row_resident) // row_align * row_align

    # ~2-4 MiB per input block amortizes the ~0.35 us per-grid-step overhead.
    tr_target = (block_target // max(1, w_eff * itemsize)) // row_align * row_align
    tr = min(tr, tr_target)

    # Ensure several blocks (pipeline overlap / both v7x cores busy) as long as
    # blocks stay reasonably large.
    if rows_aligned >= min_blocks * row_align:
        tr_split = _round_up(_cdiv(rows_aligned, min_blocks), row_align)
        tr_floor = _round_up(_cdiv(_MIN_BLOCK_BYTES, max(1, w_eff * itemsize)),
                             row_align)
        tr = min(tr, max(tr_split, tr_floor))

    return max(row_align, min(tr, rows_aligned))


# ----------------------------- kernels ----------------------------------------
def _make_roll_kernel(compute_dtype):
    """Circular 5-tap stencil along the last (lane) axis via XLU rotations,
    antisymmetric form: y = (x[i-2]-x[i+2])/12 + (8/12)*(x[i+1]-x[i-1])."""
    def kernel(x_ref, o_ref):
        x = x_ref[...].astype(compute_dtype)
        W = x.shape[-1]
        c1 = jnp.asarray(STENCIL[0] / INTERVEL, compute_dtype)   # 1/12
        c8 = jnp.asarray(STENCIL[3] / INTERVEL, compute_dtype)   # 8/12
        # pltpu.roll matches jnp.roll: roll(x, s)[:, i] == x[:, (i - s) % W]
        d2 = pltpu.roll(x, 2, 1) - pltpu.roll(x, W - 2, 1)       # x[i-2] - x[i+2]
        d1 = pltpu.roll(x, W - 1, 1) - pltpu.roll(x, 1, 1)       # x[i+1] - x[i-1]
        o_ref[...] = (c1 * d2 + c8 * d1).astype(o_ref.dtype)
    return kernel


def _circulant_kernel(x_ref, c_ref, o_ref):
    """y = (x @ C12) * (1/12) with C12 a (block-diagonal) circulant matrix whose
    entries {0, +-1, +-8} are exact in bf16.  f32 inputs use a bf16x3 split
    (3 native MXU passes, ~f32 accuracy); bf16 inputs need a single pass."""
    c = c_ref[...]                                   # bf16, exact
    if x_ref.dtype == jnp.bfloat16:
        acc = jnp.dot(x_ref[...], c, preferred_element_type=jnp.float32)
    else:
        x = x_ref[...].astype(jnp.float32)
        x0 = x.astype(jnp.bfloat16)
        r1 = x - x0.astype(jnp.float32)
        x1 = r1.astype(jnp.bfloat16)
        x2 = (r1 - x1.astype(jnp.float32)).astype(jnp.bfloat16)
        acc = jnp.dot(x0, c, preferred_element_type=jnp.float32)
        acc = acc + jnp.dot(x1, c, preferred_element_type=jnp.float32)
        acc = acc + jnp.dot(x2, c, preferred_element_type=jnp.float32)
    o_ref[...] = (acc * _INV_SCALE).astype(o_ref.dtype)


# ----------------------------- helpers ----------------------------------------
def _circulant_matrix12(W, group):
    """(group*W, group*W) block-diagonal circulant matrix, scaled by 12 so all
    entries are in {0, +-1, +-8} (exact in bf16).  For a row vector holding
    `group` concatenated length-W signals, x @ C applies 12x the circular
    five-point stencil to each signal independently."""
    j = np.arange(W)[:, None]   # input index
    i = np.arange(W)[None, :]   # output index
    diff = (j - i) % W
    C = np.zeros((W, W), np.float32)
    for d, w in ((-2, 1.0), (-1, -8.0), (1, 8.0), (2, -1.0)):
        C += np.where(diff == (d % W), np.float32(w), np.float32(0.0))
    if group > 1:
        C = np.kron(np.eye(group, dtype=np.float32), C)
    return jnp.asarray(C, dtype=jnp.bfloat16)


# ----------------------------- public wrapper ---------------------------------
def first_derivative_layer(x, *, dim=2, position=-1):
    """Replicates First_Derivative_Layer.forward for the default config:
    dim=2, position=-1, mode='five-point-stencil', pad_mode='circular',
    intervel=1."""
    assert dim == 2 and position == -1, "only the default module config is implemented"

    # NB: matches the PyTorch module exactly — a 3-D input whose dim-1 equals 1
    # is NOT unsqueezed and trips the assert below (same crash path as torch).
    expandQ = False
    if x.ndim == dim + 1 and x.shape[1] != 1:
        x = x[:, None, ...]          # unsqueeze(1)
        expandQ = True
    assert x.ndim == dim + 2

    shape = x.shape
    W = int(shape[-1])
    rows = int(np.prod(shape[:-1]))
    itemsize = int(x.dtype.itemsize)

    vmem_budget, vmem_limit, block_target, max_grouped_w, is_v5 = _budgets()

    use_roll = (W % 128 == 0)

    group = 1
    if not use_roll:
        # Group consecutive rows so the lane dim becomes a multiple of 128
        # (lane-dense stores); the circulant matrix becomes block-diagonal.
        g = 128 // math.gcd(W, 128)
        if g > 1 and g * W <= max_grouped_w:
            group = g

    x2 = x.reshape(rows, W)
    pad_rows = 0
    if group > 1 and rows % group != 0:
        # Keep the lane-dense grouped path: pad (< group) zero rows.
        pad_rows = group - rows % group
        x2 = jnp.concatenate([x2, jnp.zeros((pad_rows, W), x2.dtype)], axis=0)

    rows_eff = (rows + pad_rows) // group
    w_eff = W * group
    x2 = x2.reshape(rows_eff, w_eff)

    TR = _choose_row_tile(rows_eff, w_eff, itemsize, vmem_budget, block_target)
    grid = (_cdiv(rows_eff, TR),)          # ragged last block handled by Pallas

    cparams = pltpu.CompilerParams(
        dimension_semantics=("parallel",),
        vmem_limit_bytes=vmem_limit,
    )
    out_shape = jax.ShapeDtypeStruct((rows_eff, w_eff), x.dtype)
    x_spec = pl.BlockSpec((TR, w_eff), lambda i: (i, 0))
    o_spec = pl.BlockSpec((TR, w_eff), lambda i: (i, 0))
    io_bytes = 2 * rows_eff * w_eff * itemsize

    if use_roll:
        # bf16 compute keeps the rolled temporaries at (16,128) packing on
        # v6e/v7x; v5e has no bf16 VALU, keep f32 there.
        compute_dtype = (x.dtype if (x.dtype == jnp.bfloat16 and not is_v5)
                         else jnp.float32)
        # TODO(synk): very wide 128-aligned W would benefit from W-blocking with
        # an explicit 2-element circular halo instead of full-width row blocks.
        cost = pl.CostEstimate(flops=5 * rows_eff * w_eff, transcendentals=0,
                               bytes_accessed=io_bytes)
        y2 = pl.pallas_call(
            _make_roll_kernel(compute_dtype),
            out_shape=out_shape,
            grid=grid,
            in_specs=[x_spec],
            out_specs=o_spec,
            compiler_params=cparams,
            cost_estimate=cost,
        )(x2)
    else:
        # TODO(synk): very large W that is not a multiple of 128 would be better
        # served by a W-blocked stencil with a circular halo; here C is a dense
        # (w_eff, w_eff) matrix, only cheap for modest w_eff.
        C12 = _circulant_matrix12(W, group)
        c_spec = pl.BlockSpec((w_eff, w_eff), lambda i: (0, 0))  # stays resident
        passes = 1 if x.dtype == jnp.bfloat16 else 3
        cost = pl.CostEstimate(
            flops=2 * rows_eff * w_eff * w_eff * passes + rows_eff * w_eff,
            transcendentals=0,
            bytes_accessed=io_bytes + w_eff * w_eff * 2)
        y2 = pl.pallas_call(
            _circulant_kernel,
            out_shape=out_shape,
            grid=grid,
            in_specs=[x_spec, c_spec],
            out_specs=o_spec,
            compiler_params=cparams,
            cost_estimate=cost,
        )(x2, C12)

    y = y2.reshape(rows + pad_rows, W)
    if pad_rows:
        y = y[:rows]
    y = y.reshape(shape)
    return y[:, 0] if expandQ else y


# ----------------------------- reference & test --------------------------------
def _reference(x):
    """Pure-JAX f32 reference of the circular five-point stencil (last axis)."""
    w = STENCIL
    xf = x.astype(jnp.float32)
    return (w[0] * jnp.roll(xf, 2, axis=-1)
            + w[1] * jnp.roll(xf, 1, axis=-1)
            + w[3] * jnp.roll(xf, -1, axis=-1)
            + w[4] * jnp.roll(xf, -2, axis=-1)) / INTERVEL


if __name__ == "__main__":
    key = jax.random.PRNGKey(0)
    k1, k2, k3, k4, k5 = jax.random.split(key, 5)

    # 4-D NCHW input (B, C=1, H, W), W=32 -> grouped circulant-MXU path (w_eff=128)
    x4 = jax.random.normal(k1, (2, 1, 16, 32), dtype=jnp.float32)
    y4 = jax.block_until_ready(first_derivative_layer(x4))
    assert y4.shape == x4.shape
    np.testing.assert_allclose(np.asarray(y4), np.asarray(_reference(x4)),
                               rtol=1e-4, atol=1e-5)

    # 3-D input (B, H, W) -> exercises the expandQ / squeeze(1) path
    x3 = jax.random.normal(k2, (2, 16, 32), dtype=jnp.float32)
    y3 = jax.block_until_ready(first_derivative_layer(x3))
    assert y3.shape == x3.shape
    np.testing.assert_allclose(np.asarray(y3), np.asarray(_reference(x3)),
                               rtol=1e-4, atol=1e-5)

    # 128-aligned W -> pltpu.roll stencil path (lane-dense, antisymmetric form)
    xr = jax.random.normal(k3, (2, 1, 8, 128), dtype=jnp.float32)
    yr = jax.block_until_ready(first_derivative_layer(xr))
    assert yr.shape == xr.shape
    np.testing.assert_allclose(np.asarray(yr), np.asarray(_reference(xr)),
                               rtol=1e-4, atol=1e-5)

    # W=48 with rows not divisible by the group -> wrapper-side row padding
    xp = jax.random.normal(k4, (2, 1, 6, 48), dtype=jnp.float32)
    yp = jax.block_until_ready(first_derivative_layer(xp))
    assert yp.shape == xp.shape
    np.testing.assert_allclose(np.asarray(yp), np.asarray(_reference(xp)),
                               rtol=1e-4, atol=1e-5)

    # bf16 input on the circulant path: C (scaled by 12) is exact in bf16, so
    # the only error is the final bf16 output cast.
    xb = jax.random.normal(k5, (2, 1, 16, 32), dtype=jnp.float32).astype(jnp.bfloat16)
    yb = jax.block_until_ready(first_derivative_layer(xb))
    assert yb.shape == xb.shape and yb.dtype == jnp.bfloat16
    np.testing.assert_allclose(np.asarray(yb.astype(jnp.float32)),
                               np.asarray(_reference(xb)), rtol=2e-2, atol=2e-2)

    # TODO(synk): trainable int mode, 'three-point-stencil', non-circular pad
    # modes and position != -1 are not implemented (default config only).
    print("KERNEL_OK")
</pallas_src>

<mosaic_0001>
module attributes {stable_mosaic.version = 11 : i64} {
  func.func @_circulant_kernel(%arg0: i32, %arg1: memref<8x128xf32, #tpu.memory_space<vmem>>, %arg2: memref<128x128xbf16, #tpu.memory_space<vmem>>, %arg3: memref<8x128xf32, #tpu.memory_space<vmem>>) attributes {dimension_semantics = [#tpu.dimension_semantics<parallel>], iteration_bounds = array<i64: 1>, scalar_prefetch = 0 : i64, scratch_operands = 0 : i64, tpu.core_type = #tpu.core_type<tc>, window_params = [{transform_indices = @transform_0, window_bounds = array<i64: 8, 128>}, {pipeline_mode = #tpu.pipeline_mode<synchronous>, transform_indices = @transform_1, window_bounds = array<i64: 128, 128>}, {transform_indices = @transform_2, window_bounds = array<i64: 8, 128>}]} {
    %c0 = arith.constant 0 : index
    %c0_0 = arith.constant 0 : index
    %0 = vector.load %arg2[%c0, %c0_0] : memref<128x128xbf16, #tpu.memory_space<vmem>>, vector<128x128xbf16>
    %c0_1 = arith.constant 0 : index
    %c0_2 = arith.constant 0 : index
    %1 = vector.load %arg1[%c0_1, %c0_2] : memref<8x128xf32, #tpu.memory_space<vmem>>, vector<8x128xf32>
    %2 = arith.truncf %1 : vector<8x128xf32> to vector<8x128xbf16>
    %3 = arith.extf %2 : vector<8x128xbf16> to vector<8x128xf32>
    %4 = arith.subf %1, %3 : vector<8x128xf32>
    %5 = arith.truncf %4 : vector<8x128xf32> to vector<8x128xbf16>
    %6 = arith.extf %5 : vector<8x128xbf16> to vector<8x128xf32>
    %7 = arith.subf %4, %6 : vector<8x128xf32>
    %8 = arith.truncf %7 : vector<8x128xf32> to vector<8x128xbf16>
    %cst = arith.constant dense<0.000000e+00> : vector<8x128xf32>
    %9 = tpu.matmul %2, %0, %cst {dimension_numbers = #tpu.dot_dimension_numbers<[1], [0], [0], [1], [0, 0, 1, 1], [], []>} : vector<8x128xbf16>, vector<128x128xbf16>, vector<8x128xf32> -> vector<8x128xf32>
    %cst_3 = arith.constant dense<0.000000e+00> : vector<8x128xf32>
    %10 = tpu.matmul %5, %0, %cst_3 {dimension_numbers = #tpu.dot_dimension_numbers<[1], [0], [0], [1], [0, 0, 1, 1], [], []>} : vector<8x128xbf16>, vector<128x128xbf16>, vector<8x128xf32> -> vector<8x128xf32>
    %11 = arith.addf %9, %10 : vector<8x128xf32>
    %cst_4 = arith.constant dense<0.000000e+00> : vector<8x128xf32>
    %12 = tpu.matmul %8, %0, %cst_4 {dimension_numbers = #tpu.dot_dimension_numbers<[1], [0], [0], [1], [0, 0, 1, 1], [], []>} : vector<8x128xbf16>, vector<128x128xbf16>, vector<8x128xf32> -> vector<8x128xf32>
    %13 = arith.addf %11, %12 : vector<8x128xf32>
    %cst_5 = arith.constant 0.0833333358 : f32
    %14 = vector.broadcast %cst_5 : f32 to vector<8x128xf32>
    %15 = arith.mulf %13, %14 : vector<8x128xf32>
    %c0_6 = arith.constant 0 : index
    %c0_7 = arith.constant 0 : index
    %16 = vector.load %arg3[%c0_6, %c0_7] : memref<8x128xf32, #tpu.memory_space<vmem>>, vector<8x128xf32>
    tpu.vector_store %arg3[%c0_6, %c0_7], %15 {strides = array<i32>} : memref<8x128xf32, #tpu.memory_space<vmem>>, vector<8x128xf32>,
    return
  }
  func.func @transform_0(%arg0: i32) -> (i32, i32) {
    %c0_i32 = arith.constant 0 : i32
    %c0_i32_0 = arith.constant 0 : i32
    return %arg0, %c0_i32 : i32, i32
  }
  func.func @transform_1(%arg0: i32) -> (i32, i32) {
    %c0_i32 = arith.constant 0 : i32
    %c0_i32_0 = arith.constant 0 : i32
    %c0_i32_1 = arith.constant 0 : i32
    return %c0_i32, %c0_i32_0 : i32, i32
  }
  func.func @transform_2(%arg0: i32) -> (i32, i32) {
    %c0_i32 = arith.constant 0 : i32
    %c0_i32_0 = arith.constant 0 : i32
    return %arg0, %c0_i32 : i32, i32
  }
}

</mosaic_0001>

<llo_original>
// kernel: tpu_custom_call.1
$region0: #{tpu_custom_call.1}
  #allocation0 [shape = 'u32[]', space=smem, size = 0x4, offset = 0x4, fixed_abs, tag = 'smem constant byte address 0x4 - core index']
  #allocation1 [shape = 'u32[144,128]{1,0:T(1,128)}', space=vmem, size = 0x12000, scoped, tag = 'internal scratch']
  %s0 = inlined_call_operand.hbm [shape: f32[8,128], index: 0, kind: input, shape index: {}]
  %s1 = inlined_call_operand.hbm [shape: bf16[128,128], index: 1, kind: input, shape index: {}]
  %s2 = inlined_call_operand.hbm [shape: f32[8,128], index: 2, kind: output, shape index: {}]
  %s3 = sld [smem:[#allocation0]]
  $region26: #{tpu_custom_call.1} parent=0
    _
  %s5 = ssub.s32 1, %s3
  %s6 = scalar_select 0, %s5, %s3
  $region1: #{tpu_custom_call.1} parent=0
    #allocation2 [shape = 'u8[4096]{0}', space=vmem, size = 0x1000, scoped, tag = 'input window, operand 0, single buffered']
    #allocation3 [shape = 's32[1]{0}', space=sflag, size = 0x4, scoped, tag = 'scoped memory for tpu_custom_call.1']
    #allocation4 [shape = 's32[1]{0}', space=sflag, size = 0x4, scoped, tag = 'scoped memory for tpu_custom_call.1']
    #allocation5 [shape = 'u8[32768]{0}', space=vmem, size = 0x8000, scoped, tag = 'input window, operand 1, single buffered']
    #allocation6 [shape = 's32[1]{0}', space=sflag, size = 0x4, scoped, tag = 'scoped memory for tpu_custom_call.1']
    #allocation7 [shape = 'u8[4096]{0}', space=vmem, size = 0x1000, scoped, tag = 'output window, operand 0, single buffered']
    %7 = vsyncpa [#allocation3], 0
    %8 = vsyncpa [#allocation6], 0
    %9 = vsyncpa [#allocation4], 0
    // Predicated region
    $region2: #{tpu_custom_call.1} parent=1 // pred_check
      _
    $region3: #{tpu_custom_call.1} parent=1 // pred_check_branch
      %11 = sbr.rel (0) target = $region5
    $region4: #{tpu_custom_call.1} parent=1 // pred_region
      %s13 = ssub.s32 128, 128
      %14 = vsyncadd [#allocation3], %s13
      %s16 = sshll.u32 [#allocation2], 4
      %s17 = int_to_ptr.vmem [resolvable:$true] %s16
      %19 = dma.hbm_to_vmem [thread:$0]  %s0, 128, %s17, [#allocation3]
    $region5: #{tpu_custom_call.1} parent=1 // pred_fallthru
      _
    // Predicated region
    $region6: #{tpu_custom_call.1} parent=1 // pred_check
      _
    $region7: #{tpu_custom_call.1} parent=1 // pred_check_branch
      %21 = sbr.rel (0) target = $region9
    $region8: #{tpu_custom_call.1} parent=1 // pred_region
      %s23 = ssub.s32 1024, 1024
      %24 = vsyncadd [#allocation6], %s23
      %s25 = sshll.u32 [#allocation5], 4
      %s26 = int_to_ptr.vmem [resolvable:$true] %s25
      %31 = dma.hbm_to_vmem [thread:$0]  %s1, 1024, %s26, [#allocation6], 64, 64, 4
    $region9: #{tpu_custom_call.1} parent=1 // pred_fallthru
      _
    // Predicated region
    $region10: #{tpu_custom_call.1} parent=1 // pred_check
      _
    $region11: #{tpu_custom_call.1} parent=1 // pred_check_branch
      %33 = sbr.rel (0) target = $region13
    $region12: #{tpu_custom_call.1} parent=1 // pred_region
      %34 = dma.done [#allocation3], 128
    $region13: #{tpu_custom_call.1} parent=1 // pred_fallthru
      _
    // Predicated region
    $region14: #{tpu_custom_call.1} parent=1 // pred_check
      _
    $region15: #{tpu_custom_call.1} parent=1 // pred_check_branch
      %36 = sbr.rel (0) target = $region17
    $region16: #{tpu_custom_call.1} parent=1 // pred_region
      %37 = dma.done [#allocation6], 1024
    $region17: #{tpu_custom_call.1} parent=1 // pred_fallthru
      _
    %v39 = vld [vmem:[#allocation5] sm:$0xf]
    %v40 = vld [vmem:[#allocation5 + $0x4] sm:$0xf]
    %v41 = vld [vmem:[#allocation5 + $0x8] sm:$0xf]
    %v42 = vld [vmem:[#allocation5 + $0xc] sm:$0xf]
    %v43 = vld [vmem:[#allocation5 + $0x10] sm:$0xf]
    %v44 = vld [vmem:[#allocation5 + $0x14] sm:$0xf]
    %v45 = vld [vmem:[#allocation5 + $0x18] sm:$0xf]
    %v46 = vld [vmem:[#allocation5 + $0x1c] sm:$0xf]
    %v47 = vld [vmem:[#allocation5 + $0x20] sm:$0xf]
    %v48 = vld [vmem:[#allocation5 + $0x24] sm:$0xf]
    %v49 = vld [vmem:[#allocation5 + $0x28] sm:$0xf]
    %v50 = vld [vmem:[#allocation5 + $0x2c] sm:$0xf]
    %v51 = vld [vmem:[#allocation5 + $0x30] sm:$0xf]
    %v52 = vld [vmem:[#allocation5 + $0x34] sm:$0xf]
    %v53 = vld [vmem:[#allocation5 + $0x38] sm:$0xf]
    %v54 = vld [vmem:[#allocation5 + $0x3c] sm:$0xf]
    %v55 = vld [vmem:[#allocation2] sm:$0xff]
    %v56 = vpack.c.bf16 %v55, %v55
    %v57 = vunpack.c.l.bf16 %v56
    %v58 = vsub.f32 %v55, %v57
    %v59 = vpack.c.bf16 %v58, %v58
    %v60 = vunpack.c.l.bf16 %v59
    %v61 = vsub.f32 %v58, %v60
    %v62 = vpack.c.bf16 %v61, %v61
    %v79 = vunpack.c.l.b16 %v39
    %v80 = vunpack.c.l.b16 %v40
    %v81 = vunpack.c.l.b16 %v41
    %v82 = vunpack.c.l.b16 %v42
    %v83 = vunpack.c.l.b16 %v43
    %v84 = vunpack.c.l.b16 %v44
    %v85 = vunpack.c.l.b16 %v45
    %v86 = vunpack.c.l.b16 %v46
    %v87 = vunpack.c.l.b16 %v47
    %v88 = vunpack.c.l.b16 %v48
    %v89 = vunpack.c.l.b16 %v49
    %v90 = vunpack.c.l.b16 %v50
    %v91 = vunpack.c.l.b16 %v51
    %v92 = vunpack.c.l.b16 %v52
    %v93 = vunpack.c.l.b16 %v53
    %v94 = vunpack.c.l.b16 %v54
    %v95 = vpack.c.b16 %v80, %v79
    %v96 = vpack.c.b16 %v82, %v81
    %v97 = vpack.c.b16 %v84, %v83
    %v98 = vpack.c.b16 %v86, %v85
    %v99 = vpack.c.b16 %v88, %v87
    %v100 = vpack.c.b16 %v90, %v89
    %v101 = vpack.c.b16 %v92, %v91
    %v102 = vpack.c.b16 %v94, %v93
    %111 = vmatprep.subr.bf16.mxu0 0
    %112 = vmatpush1.bf16.msra.mxu0 %v95
    %113 = vmatprep.subr.bf16.mxu0 0
    %114 = vmatpush1.bf16.msra.mxu0 %v96
    %115 = vmatprep.subr.bf16.mxu0 0
    %116 = vmatpush1.bf16.msra.mxu0 %v97
    %117 = vmatprep.subr.bf16.mxu0 0
    %118 = vmatpush1.bf16.msra.mxu0 %v98
    %119 = vmatprep.subr.bf16.mxu0 0
    %120 = vmatpush1.bf16.msra.mxu0 %v99
    %121 = vmatprep.subr.bf16.mxu0 0
    %122 = vmatpush1.bf16.msra.mxu0 %v100
    %123 = vmatprep.subr.bf16.mxu0 0
    %124 = vmatpush1.bf16.msra.mxu0 %v101
    %125 = vmatprep.subr.bf16.mxu0 0
    %126 = vmatpush1.bf16.msra.mxu0 %v102
    %127 = vmatprep.subr.bf16.mxu0 0
    %128 = vmatpush1.bf16.msra.mxu0 0
    %129 = vmatprep.subr.bf16.mxu0 0
    %130 = vmatpush1.bf16.msra.mxu0 0
    %131 = vmatprep.subr.bf16.mxu0 0
    %132 = vmatpush1.bf16.msra.mxu0 0
    %133 = vmatprep.subr.bf16.mxu0 0
    %134 = vmatpush1.bf16.msra.mxu0 0
    %135 = vmatprep.subr.bf16.mxu0 0
    %136 = vmatpush1.bf16.msra.mxu0 0
    %137 = vmatprep.subr.bf16.mxu0 0
    %138 = vmatpush1.bf16.msra.mxu0 0
    %139 = vmatprep.subr.bf16.mxu0 0
    %140 = vmatpush1.bf16.msra.mxu0 0
    %141 = vmatprep.subr.bf16.mxu0 0
    %142 = vmatpush1.bf16.msra.mxu0 0
    %143 = vmatprep.mubr.bf16.mxu0 0
    %144 = vmatmul.mubr.bf16.gmra.mrb[0].mxu0 %v59
    %v145 = vpop.f32.mrb[0].mxu0
    %v146 = vadd.f32 0.0, %v145
    %v147 = vpop.f32.mrb[0].mxu0
    %v148 = vpop.f32.mrb[0].mxu0
    %v149 = vpop.f32.mrb[0].mxu0
    %150 = vdwg.mxu0
    %151 = vmatprep.subr.bf16.mxu0 0
    %152 = vmatpush1.bf16.msra.mxu0 %v95
    %153 = vmatprep.subr.bf16.mxu0 0
    %154 = vmatpush1.bf16.msra.mxu0 %v96
    %155 = vmatprep.subr.bf16.mxu0 0
    %156 = vmatpush1.bf16.msra.mxu0 %v97
    %157 = vmatprep.subr.bf16.mxu0 0
    %158 = vmatpush1.bf16.msra.mxu0 %v98
    %159 = vmatprep.subr.bf16.mxu0 0
    %160 = vmatpush1.bf16.msra.mxu0 %v99
    %161 = vmatprep.subr.bf16.mxu0 0
    %162 = vmatpush1.bf16.msra.mxu0 %v100
    %163 = vmatprep.subr.bf16.mxu0 0
    %164 = vmatpush1.bf16.msra.mxu0 %v101
    %165 = vmatprep.subr.bf16.mxu0 0
    %166 = vmatpush1.bf16.msra.mxu0 %v102
    %167 = vmatprep.subr.bf16.mxu0 0
    %168 = vmatpush1.bf16.msra.mxu0 0
    %169 = vmatprep.subr.bf16.mxu0 0
    %170 = vmatpush1.bf16.msra.mxu0 0
    %171 = vmatprep.subr.bf16.mxu0 0
    %172 = vmatpush1.bf16.msra.mxu0 0
    %173 = vmatprep.subr.bf16.mxu0 0
    %174 = vmatpush1.bf16.msra.mxu0 0
    %175 = vmatprep.subr.bf16.mxu0 0
    %176 = vmatpush1.bf16.msra.mxu0 0
    %177 = vmatprep.subr.bf16.mxu0 0
    %178 = vmatpush1.bf16.msra.mxu0 0
    %179 = vmatprep.subr.bf16.mxu0 0
    %180 = vmatpush1.bf16.msra.mxu0 0
    %181 = vmatprep.subr.bf16.mxu0 0
    %182 = vmatpush1.bf16.msra.mxu0 0
    %183 = vmatprep.mubr.bf16.mxu0 0
    %184 = vmatmul.mubr.bf16.gmra.mrb[0].mxu0 %v56
    %v185 = vpop.f32.mrb[0].mxu0
    %v186 = vadd.f32 %v146, %v185
    %v187 = vpop.f32.mrb[0].mxu0
    %v188 = vpop.f32.mrb[0].mxu0
    %v189 = vpop.f32.mrb[0].mxu0
    %190 = vdwg.mxu0
    %191 = vmatprep.subr.bf16.mxu0 0
    %192 = vmatpush1.bf16.msra.mxu0 %v95
    %193 = vmatprep.subr.bf16.mxu0 0
    %194 = vmatpush1.bf16.msra.mxu0 %v96
    %195 = vmatprep.subr.bf16.mxu0 0
    %196 = vmatpush1.bf16.msra.mxu0 %v97
    %197 = vmatprep.subr.bf16.mxu0 0
    %198 = vmatpush1.bf16.msra.mxu0 %v98
    %199 = vmatprep.subr.bf16.mxu0 0
    %200 = vmatpush1.bf16.msra.mxu0 %v99
    %201 = vmatprep.subr.bf16.mxu0 0
    %202 = vmatpush1.bf16.msra.mxu0 %v100
    %203 = vmatprep.subr.bf16.mxu0 0
    %204 = vmatpush1.bf16.msra.mxu0 %v101
    %205 = vmatprep.subr.bf16.mxu0 0
    %206 = vmatpush1.bf16.msra.mxu0 %v102
    %207 = vmatprep.subr.bf16.mxu0 0
    %208 = vmatpush1.bf16.msra.mxu0 0
    %209 = vmatprep.subr.bf16.mxu0 0
    %210 = vmatpush1.bf16.msra.mxu0 0
    %211 = vmatprep.subr.bf16.mxu0 0
    %212 = vmatpush1.bf16.msra.mxu0 0
    %213 = vmatprep.subr.bf16.mxu0 0
    %214 = vmatpush1.bf16.msra.mxu0 0
    %215 = vmatprep.subr.bf16.mxu0 0
    %216 = vmatpush1.bf16.msra.mxu0 0
    %217 = vmatprep.subr.bf16.mxu0 0
    %218 = vmatpush1.bf16.msra.mxu0 0
    %219 = vmatprep.subr.bf16.mxu0 0
    %220 = vmatpush1.bf16.msra.mxu0 0
    %221 = vmatprep.subr.bf16.mxu0 0
    %222 = vmatpush1.bf16.msra.mxu0 0
    %223 = vmatprep.mubr.bf16.mxu0 0
    %224 = vmatmul.mubr.bf16.gmra.mrb[0].mxu0 %v62
    %v225 = vpop.f32.mrb[0].mxu0
    %v226 = vadd.f32 0.0, %v225
    %v227 = vpop.f32.mrb[0].mxu0
    %v228 = vpop.f32.mrb[0].mxu0
    %v229 = vpop.f32.mrb[0].mxu0
    %230 = vdwg.mxu0
    %v231 = vadd.f32 %v186, %v226
    %v232 = vmul.f32 %v231, 0.083333336
    %233 = vst [vmem:[#allocation7] sm:$0xff] %v232
    // Predicated region
    $region18: #{tpu_custom_call.1} parent=1 // pred_check
      _
    $region19: #{tpu_custom_call.1} parent=1 // pred_check_branch
      %235 = sbr.rel (0) target = $region21
    $region20: #{tpu_custom_call.1} parent=1 // pred_region
      %s237 = ssub.s32 128, 128
      %238 = vsyncadd [#allocation4], %s237
      %s240 = sshll.u32 [#allocation7], 4
      %s241 = int_to_ptr.vmem [resolvable:$true] %s240
      %243 = dma.vmem_to_hbm [thread:$0]  %s241, 128, %s2, [#allocation4]
    $region21: #{tpu_custom_call.1} parent=1 // pred_fallthru
      _
    // Predicated region
    $region22: #{tpu_custom_call.1} parent=1 // pred_check
      _
    $region23: #{tpu_custom_call.1} parent=1 // pred_check_branch
      %245 = sbr.rel (0) target = $region25
    $region24: #{tpu_custom_call.1} parent=1 // pred_region
      %246 = dma.done [#allocation4], 128
    $region25: #{tpu_custom_call.1} parent=1 // pred_fallthru
      _
    %247 = vsyncpa [#allocation3], 1
    %248 = vsyncpa [#allocation6], 1
    %249 = vsyncpa [#allocation4], 1

</llo_original>
